<compile_context>
chip_gen: v7x
topology: tpu7x:2x2x1
jax: 0.10.0
libtpu: 0.0.40
codegen_flags: <defaults>
</compile_context>

<pallas_src>
import math

import jax
import jax.numpy as jnp
from jax.experimental import pallas as pl
from jax.experimental.pallas import tpu as pltpu

_HALF_LOG_2PI = 0.5 * math.log(2.0 * math.pi)
_HALF_LOG_2_OVER_PI = 0.5 * math.log(2.0 / math.pi)


def _make_log_joint_kernel(reg_prior_mu, reg_prior_sd, noise_prior_scale, n_data):
    # Fold all hyper-parameters into compile-time constants (no vector divides).
    mu = float(reg_prior_mu)
    inv_sd = 1.0 / float(reg_prior_sd)
    log_sd = math.log(float(reg_prior_sd))
    inv_scale = 1.0 / float(noise_prior_scale)
    log_scale = math.log(float(noise_prior_scale))
    n = float(n_data)

    def kernel(thetas_smem_ref, theta_rows_ref, xs_ref, ys_ref, out_ref):
        # thetas_smem_ref: SMEM (3, C) f32   rows = [theta_0, theta_1, z2]
        # theta_rows_ref : VMEM (3, C_pad) f32  same data, zero padded on lanes
        # xs_ref, ys_ref : VMEM (8, 128) f32 data tiles
        # out_ref        : VMEM (1, C_pad) f32  per-chain log joint (lane-dense)
        xs = xs_ref[...]
        ys = ys_ref[...]
        num_chains = thetas_smem_ref.shape[1]
        c_pad = out_ref.shape[1]

        lane = jax.lax.broadcasted_iota(jnp.int32, (1, c_pad), 1)

        # Hot loop: per chain, one residual pass over the data tile.
        # Only 3 VPU ops/element (mul, sub, sub) + square + reduce; no divide,
        # no per-element constant adds, no per-element transcendentals.
        def body(i, s_row):
            t0 = thetas_smem_ref[0, i]
            t1 = thetas_smem_ref[1, i]
            r = ys - t0 - t1 * xs
            s = jnp.sum(r * r)
            return s_row + jnp.where(lane == i, s, 0.0)

        s_row = jax.lax.fori_loop(
            0, num_chains, body, jnp.zeros((1, c_pad), jnp.float32), unroll=True)

        # Per-chain scalar math, vectorized lane-wise across all chains at once.
        t0_row = theta_rows_ref[0:1, :]
        t1_row = theta_rows_ref[1:2, :]
        z2_row = theta_rows_ref[2:3, :]          # unconstrained noise latent
        sigma_row = jnp.exp(z2_row)              # theta_2 = exp(z2);  log(sigma) = z2
        inv_var_row = jnp.exp(-2.0 * z2_row)     # 1 / sigma^2, no divide

        # sum_i Normal(t0 + t1*x_i, sigma).log_prob(y_i)
        data_lp = -0.5 * inv_var_row * s_row - n * (z2_row + _HALF_LOG_2PI)

        # Normal priors on theta_0, theta_1.
        z0 = (t0_row - mu) * inv_sd
        z1 = (t1_row - mu) * inv_sd
        prior01 = -0.5 * (z0 * z0 + z1 * z1) - 2.0 * (log_sd + _HALF_LOG_2PI)

        # HalfNormal prior on theta_2 (+ log|d exp(z)/dz| = z2 for the transform).
        hs = sigma_row * inv_scale
        prior2 = (_HALF_LOG_2_OVER_PI - log_scale) - 0.5 * hs * hs + z2_row

        out_ref[...] = data_lp + prior01 + prior2

    return kernel


def batched_log_joint_pallas(thetas, xs2d, ys2d, *,
                             reg_prior_mu, reg_prior_sd, noise_prior_scale):
    """Evaluate the StandardRegression log-joint for a batch of parameter sets.

    thetas: (C, 3) f32, columns = [theta_0, theta_1, theta_2_unconstrained].
    Returns (C,) f32 log-joint values.
    """
    thetas = jnp.asarray(thetas, jnp.float32)
    xs2d = jnp.asarray(xs2d, jnp.float32)
    ys2d = jnp.asarray(ys2d, jnp.float32)
    num_chains = thetas.shape[0]
    c_pad = ((num_chains + 127) // 128) * 128    # lane-dense output width

    thetas_t = thetas.T                                               # (3, C) SMEM table
    theta_rows = jnp.zeros((3, c_pad), jnp.float32).at[:, :num_chains].set(thetas_t)
    n_data = xs2d.shape[0] * xs2d.shape[1]

    kernel = _make_log_joint_kernel(
        reg_prior_mu, reg_prior_sd, noise_prior_scale, n_data)

    out = pl.pallas_call(
        kernel,
        out_shape=jax.ShapeDtypeStruct((1, c_pad), jnp.float32),
        in_specs=[
            pl.BlockSpec(memory_space=pltpu.SMEM),   # (3, C) scalar theta table
            pl.BlockSpec(memory_space=pltpu.VMEM),   # (3, C_pad) lane-dense thetas
            pl.BlockSpec(memory_space=pltpu.VMEM),   # xs tile
            pl.BlockSpec(memory_space=pltpu.VMEM),   # ys tile
        ],
        out_specs=pl.BlockSpec(memory_space=pltpu.VMEM),
    )(thetas_t, theta_rows, xs2d, ys2d)
    return out[0, :num_chains]


def standard_regression_forward(params, xs2d, ys2d,
                                reg_prior_mu, reg_prior_sd, noise_prior_scale):
    """Single-parameter-set forward, matching the PyTorch module semantics."""
    thetas = jnp.stack([
        params["theta_0"], params["theta_1"], params["theta_2_unconstrained"]
    ]).astype(jnp.float32).reshape(1, 3)
    lp = batched_log_joint_pallas(
        thetas, xs2d, ys2d,
        reg_prior_mu=reg_prior_mu, reg_prior_sd=reg_prior_sd,
        noise_prior_scale=noise_prior_scale)
    return lp[0]


# ----- reference (pure JAX) for sanity check ---------------------------------

def _normal_log_prob(x, mu, sd):
    z = (x - mu) / sd
    return -0.5 * z * z - jnp.log(sd) - _HALF_LOG_2PI


def _half_normal_log_prob(x, scale):
    return 0.5 * jnp.log(2.0 / jnp.pi) - jnp.log(scale) - 0.5 * (x / scale) ** 2


def reference_forward(params, xs2d, ys2d, reg_prior_mu, reg_prior_sd, noise_prior_scale):
    theta0 = params["theta_0"]
    theta1 = params["theta_1"]
    z2 = params["theta_2_unconstrained"]
    theta2 = jnp.exp(z2)
    c = (_normal_log_prob(theta0, reg_prior_mu, reg_prior_sd)
         + _normal_log_prob(theta1, reg_prior_mu, reg_prior_sd)
         + _half_normal_log_prob(theta2, noise_prior_scale) + z2)
    y_mu = theta0 + theta1 * xs2d
    z = (ys2d - y_mu) / theta2
    data_lp = jnp.sum(-0.5 * z * z - jnp.log(theta2) - _HALF_LOG_2PI)
    return c + data_lp


if __name__ == "__main__":
    reg_prior_mu = 0.0
    reg_prior_sd = 1.0
    noise_prior_scale = 1.0

    # Deterministic synthetic data: N = 1024 points laid out as (8, 128).
    key = jax.random.PRNGKey(0)
    kx, kn, k0, k1, k2 = jax.random.split(key, 5)
    xs2d = jax.random.normal(kx, (8, 128), dtype=jnp.float32)
    ys2d = 0.5 - 1.0 * xs2d + 0.1 * jax.random.normal(kn, (8, 128), dtype=jnp.float32)

    # --- single parameter set (module forward semantics) ---
    params = {
        "theta_0": jnp.float32(0.5),
        "theta_1": jnp.float32(-1.2),
        "theta_2_unconstrained": jnp.float32(0.1),
    }
    out = standard_regression_forward(
        params, xs2d, ys2d, reg_prior_mu, reg_prior_sd, noise_prior_scale)
    out = jax.block_until_ready(out)
    ref = reference_forward(
        params, xs2d, ys2d, reg_prior_mu, reg_prior_sd, noise_prior_scale)
    assert jnp.allclose(out, ref, rtol=1e-5, atol=1e-4), (out, ref)

    # --- batched parameter sets (amortized single pallas_call) ---
    num_chains = 8
    thetas = jnp.stack([
        0.5 + 0.3 * jax.random.normal(k0, (num_chains,), jnp.float32),
        -1.0 + 0.3 * jax.random.normal(k1, (num_chains,), jnp.float32),
        0.1 + 0.2 * jax.random.normal(k2, (num_chains,), jnp.float32),
    ], axis=-1)
    batch_out = jax.block_until_ready(batched_log_joint_pallas(
        thetas, xs2d, ys2d,
        reg_prior_mu=reg_prior_mu, reg_prior_sd=reg_prior_sd,
        noise_prior_scale=noise_prior_scale))
    batch_ref = jnp.stack([
        reference_forward(
            {"theta_0": thetas[c, 0], "theta_1": thetas[c, 1],
             "theta_2_unconstrained": thetas[c, 2]},
            xs2d, ys2d, reg_prior_mu, reg_prior_sd, noise_prior_scale)
        for c in range(num_chains)])
    assert jnp.allclose(batch_out, batch_ref, rtol=1e-5, atol=1e-4), (batch_out, batch_ref)

    print("KERNEL_OK")
</pallas_src>

<mosaic_0001>
module attributes {stable_mosaic.version = 11 : i64} {
  func.func @kernel(%arg0: memref<3x1xf32, #tpu.memory_space<smem>>, %arg1: memref<3x128xf32, #tpu.memory_space<vmem>>, %arg2: memref<8x128xf32, #tpu.memory_space<vmem>>, %arg3: memref<8x128xf32, #tpu.memory_space<vmem>>, %arg4: memref<1x128xf32, #tpu.memory_space<vmem>>) attributes {dimension_semantics = [], scalar_prefetch = 0 : i64, scratch_operands = 0 : i64, tpu.core_type = #tpu.core_type<tc>} {
    %c0 = arith.constant 0 : index
    %c0_0 = arith.constant 0 : index
    %0 = vector.load %arg2[%c0, %c0_0] : memref<8x128xf32, #tpu.memory_space<vmem>>, vector<8x128xf32>
    %c0_1 = arith.constant 0 : index
    %c0_2 = arith.constant 0 : index
    %1 = vector.load %arg3[%c0_1, %c0_2] : memref<8x128xf32, #tpu.memory_space<vmem>>, vector<8x128xf32>
    %2 = tpu.iota {dimensions = array<i32: 1>} : vector<1x128xi32>
    %cst = arith.constant 0.000000e+00 : f32
    %3 = vector.broadcast %cst : f32 to vector<1x128xf32>
    %c0_i32 = arith.constant 0 : i32
    %c0_3 = arith.constant 0 : index
    %4 = arith.index_cast %c0_i32 : i32 to index
    %5 = memref.load %arg0[%c0_3, %4] : memref<3x1xf32, #tpu.memory_space<smem>>
    %c1 = arith.constant 1 : index
    %6 = arith.index_cast %c0_i32 : i32 to index
    %7 = memref.load %arg0[%c1, %6] : memref<3x1xf32, #tpu.memory_space<smem>>
    %8 = vector.broadcast %5 : f32 to vector<8x128xf32>
    %9 = arith.subf %1, %8 : vector<8x128xf32>
    %10 = vector.broadcast %7 : f32 to vector<8x128xf32>
    %11 = arith.mulf %10, %0 : vector<8x128xf32>
    %12 = arith.subf %9, %11 : vector<8x128xf32>
    %13 = arith.mulf %12, %12 : vector<8x128xf32>
    %14 = vector.shape_cast %13 : vector<8x128xf32> to vector<1x8x128xf32>
    %cst_4 = arith.constant dense<0.000000e+00> : vector<1xf32>
    %15 = vector.multi_reduction <add>, %14, %cst_4 [1, 2] : vector<1x8x128xf32> to vector<1xf32>
    %16 = vector.shape_cast %15 : vector<1xf32> to vector<1x1x1xf32>
    %17 = vector.extract %16[0, 0, 0] : f32 from vector<1x1x1xf32>
    %18 = vector.broadcast %c0_i32 : i32 to vector<1x128xi32>
    %19 = arith.cmpi eq, %2, %18 : vector<1x128xi32>
    %cst_5 = arith.constant 0.000000e+00 : f32
    %20 = vector.broadcast %17 : f32 to vector<1x128xf32>
    %21 = vector.broadcast %cst_5 : f32 to vector<1x128xf32>
    %22 = arith.select %19, %20, %21 : vector<1x128xi1>, vector<1x128xf32>
    %23 = arith.addf %3, %22 : vector<1x128xf32>
    %c1_i32 = arith.constant 1 : i32
    %c0_6 = arith.constant 0 : index
    %c0_7 = arith.constant 0 : index
    %24 = vector.load %arg1[%c0_6, %c0_7] : memref<3x128xf32, #tpu.memory_space<vmem>>, vector<1x128xf32>
    %c1_8 = arith.constant 1 : index
    %c0_9 = arith.constant 0 : index
    %25 = vector.load %arg1[%c1_8, %c0_9] : memref<3x128xf32, #tpu.memory_space<vmem>>, vector<1x128xf32>
    %c2 = arith.constant 2 : index
    %c0_10 = arith.constant 0 : index
    %26 = vector.load %arg1[%c2, %c0_10] : memref<3x128xf32, #tpu.memory_space<vmem>>, vector<1x128xf32>
    %27 = math.exp %26 : vector<1x128xf32>
    %cst_11 = arith.constant -2.000000e+00 : f32
    %28 = vector.broadcast %cst_11 : f32 to vector<1x128xf32>
    %29 = arith.mulf %28, %26 : vector<1x128xf32>
    %30 = math.exp %29 : vector<1x128xf32>
    %cst_12 = arith.constant -5.000000e-01 : f32
    %31 = vector.broadcast %cst_12 : f32 to vector<1x128xf32>
    %32 = arith.mulf %31, %30 : vector<1x128xf32>
    %33 = arith.mulf %32, %23 : vector<1x128xf32>
    %cst_13 = arith.constant 0.918938517 : f32
    %34 = vector.broadcast %cst_13 : f32 to vector<1x128xf32>
    %35 = arith.addf %26, %34 : vector<1x128xf32>
    %cst_14 = arith.constant 1.024000e+03 : f32
    %36 = vector.broadcast %cst_14 : f32 to vector<1x128xf32>
    %37 = arith.mulf %36, %35 : vector<1x128xf32>
    %38 = arith.subf %33, %37 : vector<1x128xf32>
    %cst_15 = arith.constant 0.000000e+00 : f32
    %39 = vector.broadcast %cst_15 : f32 to vector<1x128xf32>
    %40 = arith.subf %24, %39 : vector<1x128xf32>
    %cst_16 = arith.constant 1.000000e+00 : f32
    %41 = vector.broadcast %cst_16 : f32 to vector<1x128xf32>
    %42 = arith.mulf %40, %41 : vector<1x128xf32>
    %cst_17 = arith.constant 0.000000e+00 : f32
    %43 = vector.broadcast %cst_17 : f32 to vector<1x128xf32>
    %44 = arith.subf %25, %43 : vector<1x128xf32>
    %cst_18 = arith.constant 1.000000e+00 : f32
    %45 = vector.broadcast %cst_18 : f32 to vector<1x128xf32>
    %46 = arith.mulf %44, %45 : vector<1x128xf32>
    %47 = arith.mulf %42, %42 : vector<1x128xf32>
    %48 = arith.mulf %46, %46 : vector<1x128xf32>
    %49 = arith.addf %47, %48 : vector<1x128xf32>
    %cst_19 = arith.constant -5.000000e-01 : f32
    %50 = vector.broadcast %cst_19 : f32 to vector<1x128xf32>
    %51 = arith.mulf %50, %49 : vector<1x128xf32>
    %cst_20 = arith.constant 1.83787704 : f32
    %52 = vector.broadcast %cst_20 : f32 to vector<1x128xf32>
    %53 = arith.subf %51, %52 : vector<1x128xf32>
    %cst_21 = arith.constant 1.000000e+00 : f32
    %54 = vector.broadcast %cst_21 : f32 to vector<1x128xf32>
    %55 = arith.mulf %27, %54 : vector<1x128xf32>
    %cst_22 = arith.constant 5.000000e-01 : f32
    %56 = vector.broadcast %cst_22 : f32 to vector<1x128xf32>
    %57 = arith.mulf %56, %55 : vector<1x128xf32>
    %58 = arith.mulf %57, %55 : vector<1x128xf32>
    %cst_23 = arith.constant -0.22579135 : f32
    %59 = vector.broadcast %cst_23 : f32 to vector<1x128xf32>
    %60 = arith.subf %59, %58 : vector<1x128xf32>
    %61 = arith.addf %60, %26 : vector<1x128xf32>
    %62 = arith.addf %38, %53 : vector<1x128xf32>
    %63 = arith.addf %62, %61 : vector<1x128xf32>
    %c0_24 = arith.constant 0 : index
    %c0_25 = arith.constant 0 : index
    %64 = vector.load %arg4[%c0_24, %c0_25] : memref<1x128xf32, #tpu.memory_space<vmem>>, vector<1x128xf32>
    tpu.vector_store %arg4[%c0_24, %c0_25], %63 {strides = array<i32>} : memref<1x128xf32, #tpu.memory_space<vmem>>, vector<1x128xf32>,
    return
  }
}

</mosaic_0001>

<llo_original>
// kernel: tpu_custom_call.1
$region0: #{tpu_custom_call.1}
  #allocation0 [shape = 'u32[]', space=smem, size = 0x4, offset = 0x4, fixed_abs, tag = 'smem constant byte address 0x4 - core index']
  #allocation1 [shape = 'u32[144,128]{1,0:T(1,128)}', space=vmem, size = 0x12000, scoped, tag = 'internal scratch']
  %s0 = inlined_call_operand.vmem [shape: f32[3,1], index: 0, kind: input, shape index: {}]
  %s1 = inlined_call_operand.hbm [shape: f32[3,128], index: 1, kind: input, shape index: {}]
  %s2 = inlined_call_operand.vmem [shape: f32[8,128], index: 2, kind: input, shape index: {}]
  %s3 = inlined_call_operand.vmem [shape: f32[8,128], index: 3, kind: input, shape index: {}]
  %s4 = inlined_call_operand.hbm [shape: f32[1,128], index: 4, kind: output, shape index: {}]
  %s5 = sld [smem:[#allocation0]]
  $region34: #{tpu_custom_call.1} parent=0
    _
  %s7 = ssub.s32 1, %s5
  %s8 = scalar_select 0, %s7, %s5
  $region1: #{tpu_custom_call.1} parent=0
    #allocation2 [shape = 'u8[2048]{0}', space=smem, size = 0x800, scoped, tag = 'input window, operand 0, single buffered']
    #allocation3 [shape = 's32[1]{0}', space=sflag, size = 0x4, scoped, tag = 'scoped memory for tpu_custom_call.1']
    #allocation4 [shape = 's32[1]{0}', space=sflag, size = 0x4, scoped, tag = 'scoped memory for tpu_custom_call.1']
    #allocation5 [shape = 's32[1]{0}', space=sflag, size = 0x4, scoped, tag = 'scoped memory for tpu_custom_call.1']
    #allocation6 [shape = 'u8[2048]{0}', space=vmem, size = 0x800, scoped, tag = 'input window, operand 1, single buffered']
    #allocation7 [shape = 'u8[512]{0}', space=vmem, size = 0x400, scoped, tag = 'output window, operand 0, single buffered']
    %9 = vsyncpa [#allocation5], 0
    %10 = vsyncpa [#allocation3], 0
    %11 = vsyncpa [#allocation4], 0
    // Predicated region
    $region2: #{tpu_custom_call.1} parent=1 // pred_check
      _
    $region3: #{tpu_custom_call.1} parent=1 // pred_check_branch
      %13 = sbr.rel (0) target = $region5
    $region4: #{tpu_custom_call.1} parent=1 // pred_region
      %s15 = ssub.s32 64, 64
      %16 = vsyncadd [#allocation5], %s15
      %s18 = sshll.u32 %s0, 4
      %s19 = int_to_ptr.vmem [resolvable:$true] %s18
      %21 = dma.vmem_to_smem %s19, 64, [#allocation2], [#allocation5]
    $region5: #{tpu_custom_call.1} parent=1 // pred_fallthru
      _
    // Predicated region
    $region6: #{tpu_custom_call.1} parent=1 // pred_check
      _
    $region7: #{tpu_custom_call.1} parent=1 // pred_check_branch
      %23 = sbr.rel (0) target = $region9
    $region8: #{tpu_custom_call.1} parent=1 // pred_region
      %s25 = ssub.s32 64, 64
      %26 = vsyncadd [#allocation3], %s25
      %s28 = sshll.u32 [#allocation6], 4
      %s29 = int_to_ptr.vmem [resolvable:$true] %s28
      %31 = dma.hbm_to_vmem [thread:$0]  %s1, 64, %s29, [#allocation3]
    $region9: #{tpu_custom_call.1} parent=1 // pred_fallthru
      _
    // Predicated region
    $region10: #{tpu_custom_call.1} parent=1 // pred_check
      _
    $region11: #{tpu_custom_call.1} parent=1 // pred_check_branch
      %33 = sbr.rel (0) target = $region13
    $region12: #{tpu_custom_call.1} parent=1 // pred_region
      _
    $region13: #{tpu_custom_call.1} parent=1 // pred_fallthru
      _
    // Predicated region
    $region14: #{tpu_custom_call.1} parent=1 // pred_check
      _
    $region15: #{tpu_custom_call.1} parent=1 // pred_check_branch
      %35 = sbr.rel (0) target = $region17
    $region16: #{tpu_custom_call.1} parent=1 // pred_region
      _
    $region17: #{tpu_custom_call.1} parent=1 // pred_fallthru
      _
    // Predicated region
    $region18: #{tpu_custom_call.1} parent=1 // pred_check
      _
    $region19: #{tpu_custom_call.1} parent=1 // pred_check_branch
      %37 = sbr.rel (0) target = $region21
    $region20: #{tpu_custom_call.1} parent=1 // pred_region
      %38 = dma.done [#allocation5], 64
    $region21: #{tpu_custom_call.1} parent=1 // pred_fallthru
      _
    // Predicated region
    $region22: #{tpu_custom_call.1} parent=1 // pred_check
      _
    $region23: #{tpu_custom_call.1} parent=1 // pred_check_branch
      %40 = sbr.rel (0) target = $region25
    $region24: #{tpu_custom_call.1} parent=1 // pred_region
      %41 = dma.done [#allocation3], 64
    $region25: #{tpu_custom_call.1} parent=1 // pred_fallthru
      _
    %42 = sfence
    %v43 = vld [vmem:[%s2] sm:$0xff]
    %v44 = vld [vmem:[%s3] sm:$0xff]
    %v45 = vlaneseq
    %v46 = vand.u32 %v45, 127
    %s47 = sld [smem:[#allocation2]]
    %s48 = sld [smem:[#allocation2 + $0x80]]
    %v49 = vstv %s47
    %v50 = vsub.f32 %v44, %v49
    %v51 = vstv %s48
    %v52 = vmul.f32 %v51, %v43
    %v53 = vsub.f32 %v50, %v52
    %v54 = vmul.f32 %v53, %v53
    %55 = vadd.xlane.f32.xlu0 %v54
    %v56 = vpop.xlane.xlu0 %55
    %v57 = vrot.slane %v56, 4
    %v58 = vadd.f32 %v56, %v57
    %v59 = vrot.slane %v58, 2
    %v60 = vadd.f32 %v58, %v59
    %v61 = vrot.slane %v60, 1
    %v62 = vadd.f32 %v60, %v61
    %s63 = vtos %v62
    %vm64 = vcmp.eq.s32.totalorder %v46, 0
    %v65 = vstv %s63
    %v66 = vsel %vm64, %v65, 0.0
    %v67 = vadd.f32 %v66, 0.0
    %v68 = vld [vmem:[#allocation6] sm:$0x1]
    %v69 = vld [vmem:[#allocation6 + $0x1] sm:$0x1]
    %v70 = vld [vmem:[#allocation6 + $0x2] sm:$0x1]
    %v71 = vmul.f32 %v70, 1.442695
    %v72 = vpow.pop %v71
    %v73 = vmul.f32 %v70, -2.0
    %v74 = vmul.f32 %v73, 1.442695
    %v75 = vpow.pop %v74
    %v76 = vmul.f32 %v75, -0.5
    %v77 = vmul.f32 %v76, %v67
    %v78 = vadd.f32 %v70, 0.9189385
    %v79 = vmul.f32 %v78, 1024.0
    %v80 = vsub.f32 %v77, %v79
    %v81 = vmul.f32 %v68, %v68
    %v82 = vmul.f32 %v69, %v69
    %v83 = vadd.f32 %v81, %v82
    %v84 = vmul.f32 %v83, -0.5
    %v85 = vsub.f32 %v84, 1.837877
    %v86 = vmul.f32 %v72, 0.5
    %v87 = vmul.f32 %v86, %v72
    %v88 = vsub.f32 -0.22579135, %v87
    %v89 = vadd.f32 %v88, %v70
    %v90 = vadd.f32 %v80, %v85
    %v91 = vadd.f32 %v90, %v89
    %92 = vst [vmem:[#allocation7] sm:$0x1] %v91
    // Predicated region
    $region26: #{tpu_custom_call.1} parent=1 // pred_check
      _
    $region27: #{tpu_custom_call.1} parent=1 // pred_check_branch
      %94 = sbr.rel (0) target = $region29
    $region28: #{tpu_custom_call.1} parent=1 // pred_region
      %s96 = ssub.s32 16, 16
      %97 = vsyncadd [#allocation4], %s96
      %s99 = sshll.u32 [#allocation7], 4
      %s100 = int_to_ptr.vmem [resolvable:$true] %s99
      %102 = dma.vmem_to_hbm [thread:$0]  %s100, 16, %s4, [#allocation4]
    $region29: #{tpu_custom_call.1} parent=1 // pred_fallthru
      _
    // Predicated region
    $region30: #{tpu_custom_call.1} parent=1 // pred_check
      _
    $region31: #{tpu_custom_call.1} parent=1 // pred_check_branch
      %104 = sbr.rel (0) target = $region33
    $region32: #{tpu_custom_call.1} parent=1 // pred_region
      %105 = dma.done [#allocation4], 16
    $region33: #{tpu_custom_call.1} parent=1 // pred_fallthru
      _
    %106 = vsyncpa [#allocation3], 1
    %107 = vsyncpa [#allocation4], 1
    %108 = vsyncpa [#allocation5], 1

</llo_original>
